<compile_context>
chip_gen: v7x
topology: tpu7x:2x2x1
jax: 0.10.0
libtpu: 0.0.40
codegen_flags: <defaults>
</compile_context>

<pallas_src>
import functools

import jax
import jax.numpy as jnp
from jax.experimental import pallas as pl
from jax.experimental.pallas import tpu as pltpu


def _bn_mul_kernel(x_ref, g_ref, b_ref, out_ref, bn_ref, *, eps, inv_m):
    # x_ref: (N, c_blk, HW); g_ref/b_ref: (1, c_blk, 1)
    x = x_ref[...].astype(jnp.float32)
    mean = jnp.sum(x, axis=(0, 2), keepdims=True) * inv_m
    xc = x - mean
    var = jnp.sum(xc * xc, axis=(0, 2), keepdims=True) * inv_m
    inv_std = jax.lax.rsqrt(var + eps)                      # EUP
    bn_ref[...] = (xc * inv_std).astype(bn_ref.dtype)
    scale = g_ref[...].astype(jnp.float32) * inv_std        # (1, c_blk, 1)
    shift = b_ref[...].astype(jnp.float32)
    out_ref[...] = (xc * scale + shift).astype(out_ref.dtype)


def batchnorm2d_mul(x, gamma, beta, eps=1e-5):
    """Pallas BatchNorm2dMul forward: returns (out, bn_out), both NCHW."""
    n, c, h, w = x.shape
    hw = h * w
    m = n * hw
    itemsize = x.dtype.itemsize

    # Free (contiguous) reshapes — no HBM transpose traffic.
    x3 = x.reshape(n, c, hw)
    g3 = gamma.reshape(1, c, 1)
    b3 = beta.reshape(1, c, 1)

    # Channel block: whole C when small / not 8-divisible; otherwise the
    # largest multiple of 8 dividing C such that the (N, c_blk, HW) slab stays
    # around ~3 MiB, so input + two outputs double-buffered fit comfortably in
    # scoped VMEM on every generation (v5e/v6e/v7x).
    per_ch_bytes = n * hw * itemsize
    if c % 8 != 0:
        c_blk = c
    else:
        budget = 3 * 1024 * 1024
        c_blk = min(c, max(8, (budget // max(per_ch_bytes, 1)) // 8 * 8))
        while c % c_blk != 0:
            c_blk -= 8
    grid = (c // c_blk,)

    block_bytes = n * c_blk * hw * itemsize
    vmem_limit = int(max(32 * 1024 * 1024, int(6 * block_bytes * 1.25)))

    cost = pl.CostEstimate(
        flops=7 * c * m,
        transcendentals=c,
        bytes_accessed=3 * c * m * itemsize + 2 * c * gamma.dtype.itemsize,
    )

    kernel = functools.partial(_bn_mul_kernel, eps=float(eps), inv_m=1.0 / m)

    out3, bn3 = pl.pallas_call(
        kernel,
        out_shape=(jax.ShapeDtypeStruct((n, c, hw), x.dtype),
                   jax.ShapeDtypeStruct((n, c, hw), x.dtype)),
        grid_spec=pltpu.PrefetchScalarGridSpec(
            num_scalar_prefetch=0,
            grid=grid,
            in_specs=[pl.BlockSpec((n, c_blk, hw), lambda i: (0, i, 0)),
                      pl.BlockSpec((1, c_blk, 1), lambda i: (0, i, 0)),
                      pl.BlockSpec((1, c_blk, 1), lambda i: (0, i, 0))],
            out_specs=[pl.BlockSpec((n, c_blk, hw), lambda i: (0, i, 0)),
                       pl.BlockSpec((n, c_blk, hw), lambda i: (0, i, 0))]),
        compiler_params=pltpu.CompilerParams(
            dimension_semantics=("parallel",),
            vmem_limit_bytes=vmem_limit),
        cost_estimate=cost,
    )(x3, g3, b3)

    return out3.reshape(n, c, h, w), bn3.reshape(n, c, h, w)


def _reference(x, gamma, beta, eps=1e-5):
    mean = jnp.mean(x, axis=(0, 2, 3), keepdims=True)
    var = jnp.mean((x - mean) ** 2, axis=(0, 2, 3), keepdims=True)
    bn = (x - mean) / jnp.sqrt(var + eps)
    out = gamma[None, :, None, None] * bn + beta[None, :, None, None]
    return out, bn


if __name__ == "__main__":
    key = jax.random.PRNGKey(0)
    N, C, H, W = 2, 4, 16, 16
    kx, kg, kb = jax.random.split(key, 3)
    x = jax.random.normal(kx, (N, C, H, W), dtype=jnp.float32)
    # module inits gamma=1, beta=0; use non-trivial params to exercise the math
    gamma = 1.0 + 0.1 * jax.random.normal(kg, (C,), dtype=jnp.float32)
    beta = 0.1 * jax.random.normal(kb, (C,), dtype=jnp.float32)

    out, bn_out = batchnorm2d_mul(x, gamma, beta)
    out = jax.block_until_ready(out)
    bn_out = jax.block_until_ready(bn_out)

    ref_out, ref_bn = _reference(x, gamma, beta)
    assert out.shape == (N, C, H, W) and bn_out.shape == (N, C, H, W)
    assert jnp.allclose(bn_out, ref_bn, atol=1e-4, rtol=1e-4), "bn_out mismatch"
    assert jnp.allclose(out, ref_out, atol=1e-4, rtol=1e-4), "out mismatch"

    print("KERNEL_OK")
</pallas_src>

<mosaic_0001>
module attributes {stable_mosaic.version = 11 : i64} {
  func.func @_bn_mul_kernel(%arg0: i32, %arg1: memref<2x4x256xf32, #tpu.memory_space<vmem>>, %arg2: memref<1x4x1xf32, #tpu.memory_space<vmem>>, %arg3: memref<1x4x1xf32, #tpu.memory_space<vmem>>, %arg4: memref<2x4x256xf32, #tpu.memory_space<vmem>>, %arg5: memref<2x4x256xf32, #tpu.memory_space<vmem>>) attributes {dimension_semantics = [#tpu.dimension_semantics<parallel>], iteration_bounds = array<i64: 1>, scalar_prefetch = 0 : i64, scratch_operands = 0 : i64, tpu.core_type = #tpu.core_type<tc>, window_params = [{transform_indices = @transform_0, window_bounds = array<i64: 2, 4, 256>}, {transform_indices = @transform_1, window_bounds = array<i64: 1, 4, 1>}, {transform_indices = @transform_2, window_bounds = array<i64: 1, 4, 1>}, {transform_indices = @transform_3, window_bounds = array<i64: 2, 4, 256>}, {transform_indices = @transform_4, window_bounds = array<i64: 2, 4, 256>}]} {
    %c0 = arith.constant 0 : index
    %c0_0 = arith.constant 0 : index
    %c0_1 = arith.constant 0 : index
    %0 = vector.load %arg1[%c0, %c0_0, %c0_1] : memref<2x4x256xf32, #tpu.memory_space<vmem>>, vector<2x4x256xf32>
    %cst = arith.constant dense<0.000000e+00> : vector<4xf32>
    %1 = vector.multi_reduction <add>, %0, %cst [0, 2] : vector<2x4x256xf32> to vector<4xf32>
    %2 = vector.shape_cast %1 : vector<4xf32> to vector<1x4x1xf32>
    %cst_2 = arith.constant 0.001953125 : f32
    %3 = vector.broadcast %cst_2 : f32 to vector<1x4x1xf32>
    %4 = arith.mulf %2, %3 : vector<1x4x1xf32>
    %5 = vector.broadcast %4 : vector<1x4x1xf32> to vector<2x4x256xf32>
    %6 = arith.subf %0, %5 : vector<2x4x256xf32>
    %7 = arith.mulf %6, %6 : vector<2x4x256xf32>
    %cst_3 = arith.constant dense<0.000000e+00> : vector<4xf32>
    %8 = vector.multi_reduction <add>, %7, %cst_3 [0, 2] : vector<2x4x256xf32> to vector<4xf32>
    %9 = vector.shape_cast %8 : vector<4xf32> to vector<1x4x1xf32>
    %cst_4 = arith.constant 0.001953125 : f32
    %10 = vector.broadcast %cst_4 : f32 to vector<1x4x1xf32>
    %11 = arith.mulf %9, %10 : vector<1x4x1xf32>
    %cst_5 = arith.constant 9.99999974E-6 : f32
    %12 = vector.broadcast %cst_5 : f32 to vector<1x4x1xf32>
    %13 = arith.addf %11, %12 : vector<1x4x1xf32>
    %14 = math.rsqrt %13 : vector<1x4x1xf32>
    %15 = vector.broadcast %14 : vector<1x4x1xf32> to vector<2x4x256xf32>
    %16 = arith.mulf %6, %15 : vector<2x4x256xf32>
    %c0_6 = arith.constant 0 : index
    %c0_7 = arith.constant 0 : index
    %c0_8 = arith.constant 0 : index
    %17 = vector.load %arg5[%c0_6, %c0_7, %c0_8] : memref<2x4x256xf32, #tpu.memory_space<vmem>>, vector<2x4x256xf32>
    tpu.vector_store %arg5[%c0_6, %c0_7, %c0_8], %16 {strides = array<i32>} : memref<2x4x256xf32, #tpu.memory_space<vmem>>, vector<2x4x256xf32>,
    %c0_9 = arith.constant 0 : index
    %c0_10 = arith.constant 0 : index
    %c0_11 = arith.constant 0 : index
    %18 = vector.load %arg2[%c0_9, %c0_10, %c0_11] : memref<1x4x1xf32, #tpu.memory_space<vmem>>, vector<1x4x1xf32>
    %19 = arith.mulf %18, %14 : vector<1x4x1xf32>
    %c0_12 = arith.constant 0 : index
    %c0_13 = arith.constant 0 : index
    %c0_14 = arith.constant 0 : index
    %20 = vector.load %arg3[%c0_12, %c0_13, %c0_14] : memref<1x4x1xf32, #tpu.memory_space<vmem>>, vector<1x4x1xf32>
    %21 = vector.broadcast %19 : vector<1x4x1xf32> to vector<2x4x256xf32>
    %22 = arith.mulf %6, %21 : vector<2x4x256xf32>
    %23 = vector.broadcast %20 : vector<1x4x1xf32> to vector<2x4x256xf32>
    %24 = arith.addf %22, %23 : vector<2x4x256xf32>
    %c0_15 = arith.constant 0 : index
    %c0_16 = arith.constant 0 : index
    %c0_17 = arith.constant 0 : index
    %25 = vector.load %arg4[%c0_15, %c0_16, %c0_17] : memref<2x4x256xf32, #tpu.memory_space<vmem>>, vector<2x4x256xf32>
    tpu.vector_store %arg4[%c0_15, %c0_16, %c0_17], %24 {strides = array<i32>} : memref<2x4x256xf32, #tpu.memory_space<vmem>>, vector<2x4x256xf32>,
    return
  }
  func.func @transform_0(%arg0: i32) -> (i32, i32, i32) {
    %c0_i32 = arith.constant 0 : i32
    %c0_i32_0 = arith.constant 0 : i32
    %c0_i32_1 = arith.constant 0 : i32
    return %c0_i32, %arg0, %c0_i32_0 : i32, i32, i32
  }
  func.func @transform_1(%arg0: i32) -> (i32, i32, i32) {
    %c0_i32 = arith.constant 0 : i32
    %c0_i32_0 = arith.constant 0 : i32
    %c0_i32_1 = arith.constant 0 : i32
    return %c0_i32, %arg0, %c0_i32_0 : i32, i32, i32
  }
  func.func @transform_2(%arg0: i32) -> (i32, i32, i32) {
    %c0_i32 = arith.constant 0 : i32
    %c0_i32_0 = arith.constant 0 : i32
    %c0_i32_1 = arith.constant 0 : i32
    return %c0_i32, %arg0, %c0_i32_0 : i32, i32, i32
  }
  func.func @transform_3(%arg0: i32) -> (i32, i32, i32) {
    %c0_i32 = arith.constant 0 : i32
    %c0_i32_0 = arith.constant 0 : i32
    %c0_i32_1 = arith.constant 0 : i32
    return %c0_i32, %arg0, %c0_i32_0 : i32, i32, i32
  }
  func.func @transform_4(%arg0: i32) -> (i32, i32, i32) {
    %c0_i32 = arith.constant 0 : i32
    %c0_i32_0 = arith.constant 0 : i32
    %c0_i32_1 = arith.constant 0 : i32
    return %c0_i32, %arg0, %c0_i32_0 : i32, i32, i32
  }
}

</mosaic_0001>

<llo_original>
// kernel: tpu_custom_call.1
$region0: #{tpu_custom_call.1}
  #allocation0 [shape = 'u32[]', space=smem, size = 0x4, offset = 0x4, fixed_abs, tag = 'smem constant byte address 0x4 - core index']
  #allocation1 [shape = 'u32[144,128]{1,0:T(1,128)}', space=vmem, size = 0x12000, scoped, tag = 'internal scratch']
  %s0 = inlined_call_operand.hbm [shape: f32[2,4,256], index: 0, kind: input, shape index: {}]
  %s1 = inlined_call_operand.vmem [shape: f32[1,4,1], index: 1, kind: input, shape index: {}]
  %s2 = inlined_call_operand.vmem [shape: f32[1,4,1], index: 2, kind: input, shape index: {}]
  %s3 = inlined_call_operand.hbm [shape: f32[2,4,256], index: 3, kind: output, shape index: {0}]
  %s4 = inlined_call_operand.hbm [shape: f32[2,4,256], index: 4, kind: output, shape index: {1}]
  %5 = xla_tuple %s3, %s4
  %s6 = sld [smem:[#allocation0]]
  $region34: #{tpu_custom_call.1} parent=0
    _
  %s8 = ssub.s32 1, %s6
  %s9 = scalar_select 0, %s8, %s6
  $region1: #{tpu_custom_call.1} parent=0
    #allocation2 [shape = 'u8[8192]{0}', space=vmem, size = 0x2000, scoped, tag = 'input window, operand 0, single buffered']
    #allocation3 [shape = 's32[1]{0}', space=sflag, size = 0x4, scoped, tag = 'scoped memory for tpu_custom_call.1']
    #allocation4 [shape = 's32[1]{0}', space=sflag, size = 0x4, scoped, tag = 'scoped memory for tpu_custom_call.1']
    #allocation5 [shape = 'u8[8192]{0}', space=vmem, size = 0x2000, scoped, tag = 'output window, operand 0, single buffered']
    #allocation6 [shape = 'u8[8192]{0}', space=vmem, size = 0x2000, scoped, tag = 'output window, operand 1, single buffered']
    #allocation7 [shape = 's32[1]{0}', space=sflag, size = 0x4, scoped, tag = 'scoped memory for tpu_custom_call.1']
    %10 = vsyncpa [#allocation3], 0
    %11 = vsyncpa [#allocation4], 0
    %12 = vsyncpa [#allocation7], 0
    // Predicated region
    $region2: #{tpu_custom_call.1} parent=1 // pred_check
      _
    $region3: #{tpu_custom_call.1} parent=1 // pred_check_branch
      %14 = sbr.rel (0) target = $region5
    $region4: #{tpu_custom_call.1} parent=1 // pred_region
      %s16 = ssub.s32 256, 256
      %17 = vsyncadd [#allocation3], %s16
      %s18 = sshll.u32 [#allocation2], 4
      %s19 = int_to_ptr.vmem [resolvable:$true] %s18
      %24 = dma.hbm_to_vmem [thread:$0]  %s0, 256, %s19, [#allocation3], 128, 128, 8
    $region5: #{tpu_custom_call.1} parent=1 // pred_fallthru
      _
    // Predicated region
    $region6: #{tpu_custom_call.1} parent=1 // pred_check
      _
    $region7: #{tpu_custom_call.1} parent=1 // pred_check_branch
      %26 = sbr.rel (0) target = $region9
    $region8: #{tpu_custom_call.1} parent=1 // pred_region
      _
    $region9: #{tpu_custom_call.1} parent=1 // pred_fallthru
      _
    // Predicated region
    $region10: #{tpu_custom_call.1} parent=1 // pred_check
      _
    $region11: #{tpu_custom_call.1} parent=1 // pred_check_branch
      %28 = sbr.rel (0) target = $region13
    $region12: #{tpu_custom_call.1} parent=1 // pred_region
      _
    $region13: #{tpu_custom_call.1} parent=1 // pred_fallthru
      _
    // Predicated region
    $region14: #{tpu_custom_call.1} parent=1 // pred_check
      _
    $region15: #{tpu_custom_call.1} parent=1 // pred_check_branch
      %30 = sbr.rel (0) target = $region17
    $region16: #{tpu_custom_call.1} parent=1 // pred_region
      %31 = dma.done [#allocation3], 256
    $region17: #{tpu_custom_call.1} parent=1 // pred_fallthru
      _
    %v32 = vld [vmem:[#allocation2] sm:$0xff]
    %v33 = vld [vmem:[#allocation2 + $0x8] sm:$0xff]
    %v36 = vcombine.high %v32, %v32
    %v37 = vcombine.high %v33, %v33
    %vm40 = vcmask 1043456
    %v41 = vsel %vm40, %v32, 0.0
    %v42 = vsel %vm40, %v36, 0.0
    %v43 = vadd.f32 %v41, %v42
    %v44 = vsel %vm40, %v33, 0.0
    %v45 = vadd.f32 %v43, %v44
    %v46 = vsel %vm40, %v37, 0.0
    %v47 = vadd.f32 %v45, %v46
    %48 = vadd.xlane.f32.xlu0 %v47
    %v49 = vpop.xlane.xlu0 %48
    %v50 = vmul.f32 %v49, 0.001953125
    %v53 = vunpack.c.l.s4 839922192
    %v54 = vunpack.c.0.s8 %v53
    %v55 = vlaneseq
    %v56 = vshrl.u32 %v55, 7
    %v57 = vsub.s32 %v54, %v56
    %v58 = vrot.slane %v50, %v57
    %v60 = vsub.f32 %v32, %v58
    %v61 = vsub.f32 %v33, %v58
    %v62 = vmul.f32 %v60, %v60
    %v63 = vmul.f32 %v61, %v61
    %v66 = vcombine.high %v62, %v62
    %v67 = vcombine.high %v63, %v63
    %v70 = vsel %vm40, %v62, 0.0
    %v71 = vsel %vm40, %v66, 0.0
    %v72 = vadd.f32 %v70, %v71
    %v73 = vsel %vm40, %v63, 0.0
    %v74 = vadd.f32 %v72, %v73
    %v75 = vsel %vm40, %v67, 0.0
    %v76 = vadd.f32 %v74, %v75
    %77 = vadd.xlane.f32.xlu0 %v76
    %v78 = vpop.xlane.xlu0 %77
    %v79 = vmul.f32 %v78, 0.001953125
    %v80 = vadd.f32 %v79, 1e-05
    %v81 = vrsqrt.pop %v80
    %v84 = vunpack.c.l.s4 839922192
    %v85 = vunpack.c.0.s8 %v84
    %v86 = vlaneseq
    %v87 = vshrl.u32 %v86, 7
    %v88 = vsub.s32 %v85, %v87
    %v89 = vrot.slane %v81, %v88
    %v91 = vmul.f32 %v60, %v89
    %v92 = vmul.f32 %v61, %v89
    %93 = vst [vmem:[#allocation6] sm:$0xff] %v91
    %94 = vst [vmem:[#allocation6 + $0x8] sm:$0xff] %v92
    %v95 = vld [vmem:[%s1] sm:$0xf]
    %v96 = vmul.f32 %v95, %v81
    %v97 = vld [vmem:[%s2] sm:$0xf]
    %99 = vset.pattern.permute.xlu0 0
    %100 = vperm.xlu0 %99, %v96
    %v101 = vpop.permute.xlu0 %100
    %v103 = vunpack.c.l.s4 839922192
    %v104 = vunpack.c.0.s8 %v103
    %v105 = vlaneseq
    %v106 = vshrl.u32 %v105, 7
    %v107 = vsub.s32 %v104, %v106
    %v108 = vrot.slane %v101, %v107
    %v110 = vmul.f32 %v60, %v108
    %v111 = vmul.f32 %v61, %v108
    %113 = vset.pattern.permute.xlu0 0
    %114 = vperm.xlu0 %113, %v97
    %v115 = vpop.permute.xlu0 %114
    %v117 = vunpack.c.l.s4 839922192
    %v118 = vunpack.c.0.s8 %v117
    %v119 = vlaneseq
    %v120 = vshrl.u32 %v119, 7
    %v121 = vsub.s32 %v118, %v120
    %v122 = vrot.slane %v115, %v121
    %v124 = vadd.f32 %v110, %v122
    %v125 = vadd.f32 %v111, %v122
    %126 = vst [vmem:[#allocation5] sm:$0xff] %v124
    %127 = vst [vmem:[#allocation5 + $0x8] sm:$0xff] %v125
    // Predicated region
    $region18: #{tpu_custom_call.1} parent=1 // pred_check
      _
    $region19: #{tpu_custom_call.1} parent=1 // pred_check_branch
      %129 = sbr.rel (0) target = $region21
    $region20: #{tpu_custom_call.1} parent=1 // pred_region
      %s131 = ssub.s32 256, 256
      %132 = vsyncadd [#allocation4], %s131
      %s133 = sshll.u32 [#allocation5], 4
      %s134 = int_to_ptr.vmem [resolvable:$true] %s133
      %139 = dma.vmem_to_hbm [thread:$0]  %s134, 256, %s3, [#allocation4], 128, 128, 8
    $region21: #{tpu_custom_call.1} parent=1 // pred_fallthru
      _
    // Predicated region
    $region22: #{tpu_custom_call.1} parent=1 // pred_check
      _
    $region23: #{tpu_custom_call.1} parent=1 // pred_check_branch
      %141 = sbr.rel (0) target = $region25
    $region24: #{tpu_custom_call.1} parent=1 // pred_region
      %s143 = ssub.s32 256, 256
      %144 = vsyncadd [#allocation7], %s143
      %s145 = sshll.u32 [#allocation6], 4
      %s146 = int_to_ptr.vmem [resolvable:$true] %s145
      %151 = dma.vmem_to_hbm [thread:$0]  %s146, 256, %s4, [#allocation7], 128, 128, 8
    $region25: #{tpu_custom_call.1} parent=1 // pred_fallthru
      _
    // Predicated region
    $region26: #{tpu_custom_call.1} parent=1 // pred_check
      _
    $region27: #{tpu_custom_call.1} parent=1 // pred_check_branch
      %153 = sbr.rel (0) target = $region29
    $region28: #{tpu_custom_call.1} parent=1 // pred_region
      %154 = dma.done [#allocation4], 256
    $region29: #{tpu_custom_call.1} parent=1 // pred_fallthru
      _
    // Predicated region
    $region30: #{tpu_custom_call.1} parent=1 // pred_check
      _
    $region31: #{tpu_custom_call.1} parent=1 // pred_check_branch
      %156 = sbr.rel (0) target = $region33
    $region32: #{tpu_custom_call.1} parent=1 // pred_region
      %157 = dma.done [#allocation7], 256
    $region33: #{tpu_custom_call.1} parent=1 // pred_fallthru
      _
    %158 = vsyncpa [#allocation3], 1
    %159 = vsyncpa [#allocation4], 1
    %160 = vsyncpa [#allocation7], 1

</llo_original>
